<compile_context>
chip_gen: v7x
topology: tpu7x:2x2x1
jax: 0.10.0
libtpu: 0.0.40
codegen_flags: <defaults>
</compile_context>

<pallas_src>
import math

import jax
import jax.numpy as jnp
from jax.experimental import pallas as pl
from jax.experimental.pallas import tpu as pltpu

BN_EPS = 1e-5
LANE = 128


def _round_up(v, m):
    return ((v + m - 1) // m) * m


# --------------------------------------------------------------------------
# Fused kernel
# --------------------------------------------------------------------------
def _gnn_mini_kernel(a_ref, x_ref, addmask_ref, w_ref, vec_ref, out_ref):
    a = a_ref[...]                                   # [N, N] bf16 normalized adjacency
    n = a.shape[0]
    inv_n = jnp.float32(1.0 / n)

    vec = vec_ref[...]                               # [11, 128] f32 packed vectors

    def row(i):                                      # static slice -> [1, 128]
        return vec[i:i + 1, :]

    def relu_bn(h, gamma, beta):
        # ReLU then BatchNorm1d (training-mode batch stats), fused one-pass.
        h = jnp.maximum(h, 0.0)
        s1 = jnp.sum(h, axis=0, keepdims=True)       # [1, 128]  (XLU reduce)
        s2 = jnp.sum(h * h, axis=0, keepdims=True)   # [1, 128]
        mean = s1 * inv_n
        var = jnp.maximum(s2 * inv_n - mean * mean, 0.0)   # biased variance
        return (h - mean) * jax.lax.rsqrt(var + BN_EPS) * gamma + beta

    # ---- layer 1: transform first (all operands lane-dense 128-wide), then
    #      aggregate with A_norm; bias added after aggregation (GCNConv order).
    xw = jnp.dot(x_ref[...], w_ref[0], preferred_element_type=jnp.float32)      # [N, 128]
    h = jnp.dot(a, xw.astype(jnp.bfloat16),
                preferred_element_type=jnp.float32) + row(0)                     # + b1
    h = relu_bn(h, row(1), row(2))                                               # g1, be1

    # ---- layers 2 / 3: transform then aggregate (square weights).
    for li in range(2):
        hw = jnp.dot(h.astype(jnp.bfloat16), w_ref[1 + li],
                     preferred_element_type=jnp.float32)                         # [N, 128]
        h = jnp.dot(a, hw.astype(jnp.bfloat16),
                    preferred_element_type=jnp.float32) + row(3 + 3 * li)        # + b_k
        h = relu_bn(h, row(4 + 3 * li), row(5 + 3 * li))                         # g_k, be_k

    # ---- global max pool: one broadcast + one reduce over [B_pad, N, 128].
    am = addmask_ref[...]                             # [B_pad, N] f32, 0 / -1e30
    pooled = jnp.max(h[None, :, :] + am[:, :, None], axis=1)                     # [B_pad, 128]

    # ---- lin1 -> ReLU -> lin2, bf16 MXU inputs with f32 accumulation.
    z = jnp.dot(pooled.astype(jnp.bfloat16), w_ref[3],
                preferred_element_type=jnp.float32) + row(9)                     # + bl1
    z = jnp.maximum(z, 0.0)
    out_ref[...] = jnp.dot(z.astype(jnp.bfloat16), w_ref[4],
                           preferred_element_type=jnp.float32) + row(10)         # + bl2


# --------------------------------------------------------------------------
# Host-side preprocessing (run ONCE per graph/params, cached by the caller)
# --------------------------------------------------------------------------
def prepare_gnn_inputs(x, edge_index, batch, params, num_graphs):
    """Build dense GCN-normalized adjacency, pooling mask, and packed/padded
    parameter slabs.  Hoisted out of the per-forward path."""
    (w1, b1, g1, be1, w2, b2, g2, be2, w3, b3, g3, be3,
     wl1, bl1, wl2, bl2) = params
    n, f_in = x.shape
    hidden = w1.shape[1]
    h2 = wl1.shape[1]
    assert hidden <= LANE and h2 <= LANE and f_in <= LANE
    bp = max(8, _round_up(num_graphs, 8))

    f32, bf16 = jnp.float32, jnp.bfloat16

    # --- dense GCN-normalized adjacency (PyG gcn_norm semantics: duplicate
    #     edges accumulate; add_remaining_self_loops only where missing) ---
    src, dst = edge_index[0], edge_index[1]
    a = jnp.zeros((n, n), f32).at[dst, src].add(1.0)
    idx = jnp.arange(n)
    diag = jnp.diagonal(a)
    a = a.at[idx, idx].add(jnp.where(diag > 0.0, 0.0, 1.0))
    deg = jnp.sum(a, axis=1)
    dinv = jax.lax.rsqrt(jnp.maximum(deg, 1e-12))
    a_norm = (a * dinv[:, None] * dinv[None, :]).astype(bf16)

    # --- node features padded to a lane-dense [N, 128] bf16 slab ---
    x_pad = jnp.pad(x, ((0, 0), (0, LANE - f_in))).astype(bf16)

    # --- additive pooling mask: 0 = node in graph b, -1e30 otherwise.
    #     Padded graph rows get all-zero masks (finite, sliced away later). ---
    gids = jnp.arange(bp, dtype=batch.dtype)
    member = batch[None, :] == gids[:, None]                  # [B_pad, N]
    valid = (gids < num_graphs)[:, None]
    addmask = jnp.where(member | ~valid, 0.0, -1e30).astype(f32)

    # --- packed weight stack [5, 128, 128] bf16 ---
    def pad_sq(m):
        return jnp.pad(m, ((0, LANE - m.shape[0]), (0, LANE - m.shape[1])))

    w_stack = jnp.stack([pad_sq(w1), pad_sq(w2), pad_sq(w3),
                         pad_sq(wl1), pad_sq(wl2)]).astype(bf16)

    # --- packed vector stack [11, 128] f32:
    #     b1 g1 be1 | b2 g2 be2 | b3 g3 be3 | bl1 | bl2 ---
    def pad_vec(v):
        return jnp.pad(v.reshape(1, -1), ((0, 0), (0, LANE - v.shape[-1])))

    def pad_gamma(v):                                # pad gamma with 1s (inert)
        return jnp.pad(v.reshape(1, -1), ((0, 0), (0, LANE - v.shape[-1])),
                       constant_values=1.0)

    vec_stack = jnp.concatenate(
        [pad_vec(b1), pad_gamma(g1), pad_vec(be1),
         pad_vec(b2), pad_gamma(g2), pad_vec(be2),
         pad_vec(b3), pad_gamma(g3), pad_vec(be3),
         pad_vec(bl1), pad_vec(bl2)], axis=0).astype(f32)

    return a_norm, x_pad, addmask, w_stack, vec_stack


# --------------------------------------------------------------------------
# Per-forward path: just the fused pallas_call (+ final slice)
# --------------------------------------------------------------------------
def gnn_forward(prepared, num_graphs):
    a_norm, x_pad, addmask, w_stack, vec_stack = prepared
    bp = addmask.shape[0]
    out = pl.pallas_call(
        _gnn_mini_kernel,
        out_shape=jax.ShapeDtypeStruct((bp, LANE), jnp.float32),
        in_specs=[pl.BlockSpec(memory_space=pltpu.MemorySpace.VMEM)] * 5,
        out_specs=pl.BlockSpec(memory_space=pltpu.MemorySpace.VMEM),
    )(a_norm, x_pad, addmask, w_stack, vec_stack)
    return out[:num_graphs, :1]                               # [B, 1]


def protein_dna_gnn_mini(x, edge_index, batch, params, num_graphs):
    """Convenience wrapper: prepare (once) + forward.  For repeated calls on a
    static graph, cache prepare_gnn_inputs() and call gnn_forward() only."""
    prepared = prepare_gnn_inputs(x, edge_index, batch, params, num_graphs)
    return gnn_forward(prepared, num_graphs)


# --------------------------------------------------------------------------
# Deterministic, PyTorch-default-style parameter init (logical shapes)
# --------------------------------------------------------------------------
def _init_params(key, f_in, hidden):
    ks = jax.random.split(key, 10)

    def u(k, shape, fan_in):
        s = 1.0 / math.sqrt(fan_in)
        return jax.random.uniform(k, shape, jnp.float32, -s, s)

    h2 = hidden // 2
    ones = lambda c: jnp.ones((1, c), jnp.float32)
    zeros = lambda c: jnp.zeros((1, c), jnp.float32)
    return (
        # conv1: W, bias, bn gamma, bn beta
        u(ks[0], (f_in, hidden), f_in), zeros(hidden), ones(hidden), zeros(hidden),
        # conv2
        u(ks[1], (hidden, hidden), hidden), zeros(hidden), ones(hidden), zeros(hidden),
        # conv3
        u(ks[2], (hidden, hidden), hidden), zeros(hidden), ones(hidden), zeros(hidden),
        # lin1
        u(ks[3], (hidden, h2), hidden), u(ks[4], (1, h2), hidden),
        # lin2
        u(ks[5], (h2, 1), h2), u(ks[6], (1, 1), h2),
    )


if __name__ == "__main__":
    key = jax.random.PRNGKey(0)
    k_x, k_src, k_dst, k_params = jax.random.split(key, 4)

    N, F_IN, HIDDEN, B, E = 16, 8, 32, 2, 40

    x = jax.random.normal(k_x, (N, F_IN), jnp.float32)

    # random undirected edge list (symmetrized), [2, 2E]
    src = jax.random.randint(k_src, (E,), 0, N, dtype=jnp.int32)
    dst = jax.random.randint(k_dst, (E,), 0, N, dtype=jnp.int32)
    edge_index = jnp.stack([jnp.concatenate([src, dst]),
                            jnp.concatenate([dst, src])])
    edge_attr = jnp.ones((2 * E, 1), jnp.float32)  # unused by the mini model (matches reference)

    # two graphs: first half of nodes -> graph 0, second half -> graph 1
    batch = jnp.concatenate([jnp.zeros(N // 2, jnp.int32),
                             jnp.ones(N - N // 2, jnp.int32)])

    params = _init_params(k_params, F_IN, HIDDEN)

    # Prepare once (hoisted preprocessing), then run the fused kernel.
    prepared = prepare_gnn_inputs(x, edge_index, batch, params, num_graphs=B)
    prepared = jax.tree_util.tree_map(jax.block_until_ready, prepared)

    out = gnn_forward(prepared, num_graphs=B)
    out = jax.block_until_ready(out)
    assert out.shape == (B, 1) and out.dtype == jnp.float32
    assert bool(jnp.all(jnp.isfinite(out)))
    print("KERNEL_OK")
</pallas_src>

<mosaic_0001>
module attributes {stable_mosaic.version = 11 : i64} {
  func.func @_gnn_mini_kernel(%arg0: memref<16x16xbf16, #tpu.memory_space<vmem>>, %arg1: memref<16x128xbf16, #tpu.memory_space<vmem>>, %arg2: memref<8x16xf32, #tpu.memory_space<vmem>>, %arg3: memref<5x128x128xbf16, #tpu.memory_space<vmem>>, %arg4: memref<11x128xf32, #tpu.memory_space<vmem>>, %arg5: memref<8x128xf32, #tpu.memory_space<vmem>>) attributes {dimension_semantics = [], scalar_prefetch = 0 : i64, scratch_operands = 0 : i64, tpu.core_type = #tpu.core_type<tc>} {
    %c0 = arith.constant 0 : index
    %c0_0 = arith.constant 0 : index
    %0 = vector.load %arg0[%c0, %c0_0] : memref<16x16xbf16, #tpu.memory_space<vmem>>, vector<16x16xbf16>
    %c0_1 = arith.constant 0 : index
    %c0_2 = arith.constant 0 : index
    %1 = vector.load %arg4[%c0_1, %c0_2] : memref<11x128xf32, #tpu.memory_space<vmem>>, vector<11x128xf32>
    %c0_3 = arith.constant 0 : index
    %c0_4 = arith.constant 0 : index
    %2 = vector.load %arg1[%c0_3, %c0_4] : memref<16x128xbf16, #tpu.memory_space<vmem>>, vector<16x128xbf16>
    %c0_5 = arith.constant 0 : index
    %c0_6 = arith.constant 0 : index
    %c0_7 = arith.constant 0 : index
    %3 = vector.load %arg3[%c0_5, %c0_6, %c0_7] : memref<5x128x128xbf16, #tpu.memory_space<vmem>>, vector<1x128x128xbf16>
    %4 = vector.shape_cast %3 : vector<1x128x128xbf16> to vector<128x128xbf16>
    %cst = arith.constant dense<0.000000e+00> : vector<16x128xf32>
    %5 = tpu.matmul %2, %4, %cst {dimension_numbers = #tpu.dot_dimension_numbers<[1], [0], [0], [1], [0, 0, 1, 1], [], []>} : vector<16x128xbf16>, vector<128x128xbf16>, vector<16x128xf32> -> vector<16x128xf32>
    %6 = arith.truncf %5 : vector<16x128xf32> to vector<16x128xbf16>
    %cst_8 = arith.constant dense<0.000000e+00> : vector<16x128xf32>
    %7 = tpu.matmul %0, %6, %cst_8 {dimension_numbers = #tpu.dot_dimension_numbers<[1], [0], [0], [1], [0, 0, 1, 1], [], []>} : vector<16x16xbf16>, vector<16x128xbf16>, vector<16x128xf32> -> vector<16x128xf32>
    %8 = vector.extract_strided_slice %1 {offsets = [0, 0], sizes = [1, 128], strides = [1, 1]} : vector<11x128xf32> to vector<1x128xf32>
    %9 = vector.broadcast %8 : vector<1x128xf32> to vector<16x128xf32>
    %10 = arith.addf %7, %9 : vector<16x128xf32>
    %11 = vector.extract_strided_slice %1 {offsets = [1, 0], sizes = [1, 128], strides = [1, 1]} : vector<11x128xf32> to vector<1x128xf32>
    %12 = vector.extract_strided_slice %1 {offsets = [2, 0], sizes = [1, 128], strides = [1, 1]} : vector<11x128xf32> to vector<1x128xf32>
    %cst_9 = arith.constant 0.000000e+00 : f32
    %13 = vector.broadcast %cst_9 : f32 to vector<16x128xf32>
    %14 = arith.maximumf %10, %13 : vector<16x128xf32>
    %cst_10 = arith.constant dense<0.000000e+00> : vector<128xf32>
    %15 = vector.multi_reduction <add>, %14, %cst_10 [0] : vector<16x128xf32> to vector<128xf32>
    %16 = vector.shape_cast %15 : vector<128xf32> to vector<1x128xf32>
    %17 = arith.mulf %14, %14 : vector<16x128xf32>
    %cst_11 = arith.constant dense<0.000000e+00> : vector<128xf32>
    %18 = vector.multi_reduction <add>, %17, %cst_11 [0] : vector<16x128xf32> to vector<128xf32>
    %19 = vector.shape_cast %18 : vector<128xf32> to vector<1x128xf32>
    %cst_12 = arith.constant 6.250000e-02 : f32
    %20 = vector.broadcast %cst_12 : f32 to vector<1x128xf32>
    %21 = arith.mulf %16, %20 : vector<1x128xf32>
    %cst_13 = arith.constant 6.250000e-02 : f32
    %22 = vector.broadcast %cst_13 : f32 to vector<1x128xf32>
    %23 = arith.mulf %19, %22 : vector<1x128xf32>
    %24 = arith.mulf %21, %21 : vector<1x128xf32>
    %25 = arith.subf %23, %24 : vector<1x128xf32>
    %cst_14 = arith.constant 0.000000e+00 : f32
    %26 = vector.broadcast %cst_14 : f32 to vector<1x128xf32>
    %27 = arith.maximumf %25, %26 : vector<1x128xf32>
    %28 = vector.broadcast %21 : vector<1x128xf32> to vector<16x128xf32>
    %29 = arith.subf %14, %28 : vector<16x128xf32>
    %cst_15 = arith.constant 9.99999974E-6 : f32
    %30 = vector.broadcast %cst_15 : f32 to vector<1x128xf32>
    %31 = arith.addf %27, %30 : vector<1x128xf32>
    %32 = math.rsqrt %31 : vector<1x128xf32>
    %33 = vector.broadcast %32 : vector<1x128xf32> to vector<16x128xf32>
    %34 = arith.mulf %29, %33 : vector<16x128xf32>
    %35 = vector.broadcast %11 : vector<1x128xf32> to vector<16x128xf32>
    %36 = arith.mulf %34, %35 : vector<16x128xf32>
    %37 = vector.broadcast %12 : vector<1x128xf32> to vector<16x128xf32>
    %38 = arith.addf %36, %37 : vector<16x128xf32>
    %39 = arith.truncf %38 : vector<16x128xf32> to vector<16x128xbf16>
    %c1 = arith.constant 1 : index
    %c0_16 = arith.constant 0 : index
    %c0_17 = arith.constant 0 : index
    %40 = vector.load %arg3[%c1, %c0_16, %c0_17] : memref<5x128x128xbf16, #tpu.memory_space<vmem>>, vector<1x128x128xbf16>
    %41 = vector.shape_cast %40 : vector<1x128x128xbf16> to vector<128x128xbf16>
    %cst_18 = arith.constant dense<0.000000e+00> : vector<16x128xf32>
    %42 = tpu.matmul %39, %41, %cst_18 {dimension_numbers = #tpu.dot_dimension_numbers<[1], [0], [0], [1], [0, 0, 1, 1], [], []>} : vector<16x128xbf16>, vector<128x128xbf16>, vector<16x128xf32> -> vector<16x128xf32>
    %43 = arith.truncf %42 : vector<16x128xf32> to vector<16x128xbf16>
    %cst_19 = arith.constant dense<0.000000e+00> : vector<16x128xf32>
    %44 = tpu.matmul %0, %43, %cst_19 {dimension_numbers = #tpu.dot_dimension_numbers<[1], [0], [0], [1], [0, 0, 1, 1], [], []>} : vector<16x16xbf16>, vector<16x128xbf16>, vector<16x128xf32> -> vector<16x128xf32>
    %45 = vector.extract_strided_slice %1 {offsets = [3, 0], sizes = [1, 128], strides = [1, 1]} : vector<11x128xf32> to vector<1x128xf32>
    %46 = vector.broadcast %45 : vector<1x128xf32> to vector<16x128xf32>
    %47 = arith.addf %44, %46 : vector<16x128xf32>
    %48 = vector.extract_strided_slice %1 {offsets = [4, 0], sizes = [1, 128], strides = [1, 1]} : vector<11x128xf32> to vector<1x128xf32>
    %49 = vector.extract_strided_slice %1 {offsets = [5, 0], sizes = [1, 128], strides = [1, 1]} : vector<11x128xf32> to vector<1x128xf32>
    %cst_20 = arith.constant 0.000000e+00 : f32
    %50 = vector.broadcast %cst_20 : f32 to vector<16x128xf32>
    %51 = arith.maximumf %47, %50 : vector<16x128xf32>
    %cst_21 = arith.constant dense<0.000000e+00> : vector<128xf32>
    %52 = vector.multi_reduction <add>, %51, %cst_21 [0] : vector<16x128xf32> to vector<128xf32>
    %53 = vector.shape_cast %52 : vector<128xf32> to vector<1x128xf32>
    %54 = arith.mulf %51, %51 : vector<16x128xf32>
    %cst_22 = arith.constant dense<0.000000e+00> : vector<128xf32>
    %55 = vector.multi_reduction <add>, %54, %cst_22 [0] : vector<16x128xf32> to vector<128xf32>
    %56 = vector.shape_cast %55 : vector<128xf32> to vector<1x128xf32>
    %cst_23 = arith.constant 6.250000e-02 : f32
    %57 = vector.broadcast %cst_23 : f32 to vector<1x128xf32>
    %58 = arith.mulf %53, %57 : vector<1x128xf32>
    %cst_24 = arith.constant 6.250000e-02 : f32
    %59 = vector.broadcast %cst_24 : f32 to vector<1x128xf32>
    %60 = arith.mulf %56, %59 : vector<1x128xf32>
    %61 = arith.mulf %58, %58 : vector<1x128xf32>
    %62 = arith.subf %60, %61 : vector<1x128xf32>
    %cst_25 = arith.constant 0.000000e+00 : f32
    %63 = vector.broadcast %cst_25 : f32 to vector<1x128xf32>
    %64 = arith.maximumf %62, %63 : vector<1x128xf32>
    %65 = vector.broadcast %58 : vector<1x128xf32> to vector<16x128xf32>
    %66 = arith.subf %51, %65 : vector<16x128xf32>
    %cst_26 = arith.constant 9.99999974E-6 : f32
    %67 = vector.broadcast %cst_26 : f32 to vector<1x128xf32>
    %68 = arith.addf %64, %67 : vector<1x128xf32>
    %69 = math.rsqrt %68 : vector<1x128xf32>
    %70 = vector.broadcast %69 : vector<1x128xf32> to vector<16x128xf32>
    %71 = arith.mulf %66, %70 : vector<16x128xf32>
    %72 = vector.broadcast %48 : vector<1x128xf32> to vector<16x128xf32>
    %73 = arith.mulf %71, %72 : vector<16x128xf32>
    %74 = vector.broadcast %49 : vector<1x128xf32> to vector<16x128xf32>
    %75 = arith.addf %73, %74 : vector<16x128xf32>
    %76 = arith.truncf %75 : vector<16x128xf32> to vector<16x128xbf16>
    %c2 = arith.constant 2 : index
    %c0_27 = arith.constant 0 : index
    %c0_28 = arith.constant 0 : index
    %77 = vector.load %arg3[%c2, %c0_27, %c0_28] : memref<5x128x128xbf16, #tpu.memory_space<vmem>>, vector<1x128x128xbf16>
    %78 = vector.shape_cast %77 : vector<1x128x128xbf16> to vector<128x128xbf16>
    %cst_29 = arith.constant dense<0.000000e+00> : vector<16x128xf32>
    %79 = tpu.matmul %76, %78, %cst_29 {dimension_numbers = #tpu.dot_dimension_numbers<[1], [0], [0], [1], [0, 0, 1, 1], [], []>} : vector<16x128xbf16>, vector<128x128xbf16>, vector<16x128xf32> -> vector<16x128xf32>
    %80 = arith.truncf %79 : vector<16x128xf32> to vector<16x128xbf16>
    %cst_30 = arith.constant dense<0.000000e+00> : vector<16x128xf32>
    %81 = tpu.matmul %0, %80, %cst_30 {dimension_numbers = #tpu.dot_dimension_numbers<[1], [0], [0], [1], [0, 0, 1, 1], [], []>} : vector<16x16xbf16>, vector<16x128xbf16>, vector<16x128xf32> -> vector<16x128xf32>
    %82 = vector.extract_strided_slice %1 {offsets = [6, 0], sizes = [1, 128], strides = [1, 1]} : vector<11x128xf32> to vector<1x128xf32>
    %83 = vector.broadcast %82 : vector<1x128xf32> to vector<16x128xf32>
    %84 = arith.addf %81, %83 : vector<16x128xf32>
    %85 = vector.extract_strided_slice %1 {offsets = [7, 0], sizes = [1, 128], strides = [1, 1]} : vector<11x128xf32> to vector<1x128xf32>
    %86 = vector.extract_strided_slice %1 {offsets = [8, 0], sizes = [1, 128], strides = [1, 1]} : vector<11x128xf32> to vector<1x128xf32>
    %cst_31 = arith.constant 0.000000e+00 : f32
    %87 = vector.broadcast %cst_31 : f32 to vector<16x128xf32>
    %88 = arith.maximumf %84, %87 : vector<16x128xf32>
    %cst_32 = arith.constant dense<0.000000e+00> : vector<128xf32>
    %89 = vector.multi_reduction <add>, %88, %cst_32 [0] : vector<16x128xf32> to vector<128xf32>
    %90 = vector.shape_cast %89 : vector<128xf32> to vector<1x128xf32>
    %91 = arith.mulf %88, %88 : vector<16x128xf32>
    %cst_33 = arith.constant dense<0.000000e+00> : vector<128xf32>
    %92 = vector.multi_reduction <add>, %91, %cst_33 [0] : vector<16x128xf32> to vector<128xf32>
    %93 = vector.shape_cast %92 : vector<128xf32> to vector<1x128xf32>
    %cst_34 = arith.constant 6.250000e-02 : f32
    %94 = vector.broadcast %cst_34 : f32 to vector<1x128xf32>
    %95 = arith.mulf %90, %94 : vector<1x128xf32>
    %cst_35 = arith.constant 6.250000e-02 : f32
    %96 = vector.broadcast %cst_35 : f32 to vector<1x128xf32>
    %97 = arith.mulf %93, %96 : vector<1x128xf32>
    %98 = arith.mulf %95, %95 : vector<1x128xf32>
    %99 = arith.subf %97, %98 : vector<1x128xf32>
    %cst_36 = arith.constant 0.000000e+00 : f32
    %100 = vector.broadcast %cst_36 : f32 to vector<1x128xf32>
    %101 = arith.maximumf %99, %100 : vector<1x128xf32>
    %102 = vector.broadcast %95 : vector<1x128xf32> to vector<16x128xf32>
    %103 = arith.subf %88, %102 : vector<16x128xf32>
    %cst_37 = arith.constant 9.99999974E-6 : f32
    %104 = vector.broadcast %cst_37 : f32 to vector<1x128xf32>
    %105 = arith.addf %101, %104 : vector<1x128xf32>
    %106 = math.rsqrt %105 : vector<1x128xf32>
    %107 = vector.broadcast %106 : vector<1x128xf32> to vector<16x128xf32>
    %108 = arith.mulf %103, %107 : vector<16x128xf32>
    %109 = vector.broadcast %85 : vector<1x128xf32> to vector<16x128xf32>
    %110 = arith.mulf %108, %109 : vector<16x128xf32>
    %111 = vector.broadcast %86 : vector<1x128xf32> to vector<16x128xf32>
    %112 = arith.addf %110, %111 : vector<16x128xf32>
    %c0_38 = arith.constant 0 : index
    %c0_39 = arith.constant 0 : index
    %113 = vector.load %arg2[%c0_38, %c0_39] : memref<8x16xf32, #tpu.memory_space<vmem>>, vector<8x16xf32>
    %114 = vector.shape_cast %112 : vector<16x128xf32> to vector<1x16x128xf32>
    %115 = vector.shape_cast %113 : vector<8x16xf32> to vector<8x16x1xf32>
    %116 = vector.broadcast %114 : vector<1x16x128xf32> to vector<8x16x128xf32>
    %117 = vector.broadcast %115 : vector<8x16x1xf32> to vector<8x16x128xf32>
    %118 = arith.addf %116, %117 : vector<8x16x128xf32>
    %cst_40 = arith.constant dense<0xFF800000> : vector<8x128xf32>
    %119 = vector.multi_reduction <maximumf>, %118, %cst_40 [1] : vector<8x16x128xf32> to vector<8x128xf32>
    %120 = arith.truncf %119 : vector<8x128xf32> to vector<8x128xbf16>
    %c3 = arith.constant 3 : index
    %c0_41 = arith.constant 0 : index
    %c0_42 = arith.constant 0 : index
    %121 = vector.load %arg3[%c3, %c0_41, %c0_42] : memref<5x128x128xbf16, #tpu.memory_space<vmem>>, vector<1x128x128xbf16>
    %122 = vector.shape_cast %121 : vector<1x128x128xbf16> to vector<128x128xbf16>
    %cst_43 = arith.constant dense<0.000000e+00> : vector<8x128xf32>
    %123 = tpu.matmul %120, %122, %cst_43 {dimension_numbers = #tpu.dot_dimension_numbers<[1], [0], [0], [1], [0, 0, 1, 1], [], []>} : vector<8x128xbf16>, vector<128x128xbf16>, vector<8x128xf32> -> vector<8x128xf32>
    %124 = vector.extract_strided_slice %1 {offsets = [9, 0], sizes = [1, 128], strides = [1, 1]} : vector<11x128xf32> to vector<1x128xf32>
    %125 = vector.broadcast %124 : vector<1x128xf32> to vector<8x128xf32>
    %126 = arith.addf %123, %125 : vector<8x128xf32>
    %cst_44 = arith.constant 0.000000e+00 : f32
    %127 = vector.broadcast %cst_44 : f32 to vector<8x128xf32>
    %128 = arith.maximumf %126, %127 : vector<8x128xf32>
    %129 = arith.truncf %128 : vector<8x128xf32> to vector<8x128xbf16>
    %c4 = arith.constant 4 : index
    %c0_45 = arith.constant 0 : index
    %c0_46 = arith.constant 0 : index
    %130 = vector.load %arg3[%c4, %c0_45, %c0_46] : memref<5x128x128xbf16, #tpu.memory_space<vmem>>, vector<1x128x128xbf16>
    %131 = vector.shape_cast %130 : vector<1x128x128xbf16> to vector<128x128xbf16>
    %cst_47 = arith.constant dense<0.000000e+00> : vector<8x128xf32>
    %132 = tpu.matmul %129, %131, %cst_47 {dimension_numbers = #tpu.dot_dimension_numbers<[1], [0], [0], [1], [0, 0, 1, 1], [], []>} : vector<8x128xbf16>, vector<128x128xbf16>, vector<8x128xf32> -> vector<8x128xf32>
    %133 = vector.extract_strided_slice %1 {offsets = [10, 0], sizes = [1, 128], strides = [1, 1]} : vector<11x128xf32> to vector<1x128xf32>
    %134 = vector.broadcast %133 : vector<1x128xf32> to vector<8x128xf32>
    %135 = arith.addf %132, %134 : vector<8x128xf32>
    %c0_48 = arith.constant 0 : index
    %c0_49 = arith.constant 0 : index
    %136 = vector.load %arg5[%c0_48, %c0_49] : memref<8x128xf32, #tpu.memory_space<vmem>>, vector<8x128xf32>
    tpu.vector_store %arg5[%c0_48, %c0_49], %135 {strides = array<i32>} : memref<8x128xf32, #tpu.memory_space<vmem>>, vector<8x128xf32>,
    return
  }
}

</mosaic_0001>

<llo_original>
// kernel: tpu_custom_call.1
$region0: #{tpu_custom_call.1}
  #allocation0 [shape = 'u32[]', space=smem, size = 0x4, offset = 0x4, fixed_abs, tag = 'smem constant byte address 0x4 - core index']
  #allocation1 [shape = 'u32[144,128]{1,0:T(1,128)}', space=vmem, size = 0x12000, scoped, tag = 'internal scratch']
  %s0 = inlined_call_operand.hbm [shape: bf16[16,16], index: 0, kind: input, shape index: {}]
  %s1 = inlined_call_operand.hbm [shape: bf16[16,128], index: 1, kind: input, shape index: {}]
  %s2 = inlined_call_operand.hbm [shape: f32[8,16], index: 2, kind: input, shape index: {}]
  %s3 = inlined_call_operand.hbm [shape: bf16[5,128,128], index: 3, kind: input, shape index: {}]
  %s4 = inlined_call_operand.hbm [shape: f32[11,128], index: 4, kind: input, shape index: {}]
  %s5 = inlined_call_operand.hbm [shape: f32[8,128], index: 5, kind: output, shape index: {}]
  %s6 = sld [smem:[#allocation0]]
  $region50: #{tpu_custom_call.1} parent=0
    _
  %s8 = ssub.s32 1, %s6
  %s9 = scalar_select 0, %s8, %s6
  $region1: #{tpu_custom_call.1} parent=0
    #allocation2 [shape = 'u8[4096]{0}', space=vmem, size = 0x1000, scoped, tag = 'input window, operand 0, single buffered']
    #allocation3 [shape = 's32[1]{0}', space=sflag, size = 0x4, scoped, tag = 'scoped memory for tpu_custom_call.1']
    #allocation4 [shape = 's32[1]{0}', space=sflag, size = 0x4, scoped, tag = 'scoped memory for tpu_custom_call.1']
    #allocation5 [shape = 'u8[4096]{0}', space=vmem, size = 0x1000, scoped, tag = 'input window, operand 1, single buffered']
    #allocation6 [shape = 's32[1]{0}', space=sflag, size = 0x4, scoped, tag = 'scoped memory for tpu_custom_call.1']
    #allocation7 [shape = 'u8[4096]{0}', space=vmem, size = 0x1000, scoped, tag = 'input window, operand 2, single buffered']
    #allocation8 [shape = 'u8[163840]{0}', space=vmem, size = 0x28000, scoped, tag = 'input window, operand 3, single buffered']
    #allocation9 [shape = 's32[1]{0}', space=sflag, size = 0x4, scoped, tag = 'scoped memory for tpu_custom_call.1']
    #allocation10 [shape = 'u8[8192]{0}', space=vmem, size = 0x2000, scoped, tag = 'input window, operand 4, single buffered']
    #allocation11 [shape = 'u8[4096]{0}', space=vmem, size = 0x1000, scoped, tag = 'output window, operand 0, single buffered']
    %10 = vsyncpa [#allocation3], 0
    %11 = vsyncpa [#allocation6], 0
    %12 = vsyncpa [#allocation9], 0
    %13 = vsyncpa [#allocation4], 0
    // Predicated region
    $region2: #{tpu_custom_call.1} parent=1 // pred_check
      _
    $region3: #{tpu_custom_call.1} parent=1 // pred_check_branch
      %15 = sbr.rel (0) target = $region5
    $region4: #{tpu_custom_call.1} parent=1 // pred_region
      %s17 = ssub.s32 128, 128
      %18 = vsyncadd [#allocation3], %s17
      %s19 = sshll.u32 [#allocation2], 4
      %s20 = int_to_ptr.vmem [resolvable:$true] %s19
      %25 = dma.hbm_to_vmem [thread:$0]  %s0, 128, %s20, [#allocation3], 64, 64, 4
    $region5: #{tpu_custom_call.1} parent=1 // pred_fallthru
      _
    // Predicated region
    $region6: #{tpu_custom_call.1} parent=1 // pred_check
      _
    $region7: #{tpu_custom_call.1} parent=1 // pred_check_branch
      %27 = sbr.rel (0) target = $region9
    $region8: #{tpu_custom_call.1} parent=1 // pred_region
      %s29 = ssub.s32 128, 128
      %30 = vsyncadd [#allocation6], %s29
      %s31 = sshll.u32 [#allocation5], 4
      %s32 = int_to_ptr.vmem [resolvable:$true] %s31
      %37 = dma.hbm_to_vmem [thread:$0]  %s1, 128, %s32, [#allocation6], 64, 64, 4
    $region9: #{tpu_custom_call.1} parent=1 // pred_fallthru
      _
    // Predicated region
    $region10: #{tpu_custom_call.1} parent=1 // pred_check
      _
    $region11: #{tpu_custom_call.1} parent=1 // pred_check_branch
      %39 = sbr.rel (0) target = $region13
    $region12: #{tpu_custom_call.1} parent=1 // pred_region
      %s41 = ssub.s32 128, 128
      %42 = vsyncadd [#allocation6], %s41
      %s44 = sshll.u32 [#allocation7], 4
      %s45 = int_to_ptr.vmem [resolvable:$true] %s44
      %47 = dma.hbm_to_vmem [thread:$0]  %s2, 128, %s45, [#allocation6]
    $region13: #{tpu_custom_call.1} parent=1 // pred_fallthru
      _
    // Predicated region
    $region14: #{tpu_custom_call.1} parent=1 // pred_check
      _
    $region15: #{tpu_custom_call.1} parent=1 // pred_check_branch
      %49 = sbr.rel (0) target = $region17
    $region16: #{tpu_custom_call.1} parent=1 // pred_region
      %s51 = ssub.s32 5120, 5120
      %52 = vsyncadd [#allocation9], %s51
      %s53 = sshll.u32 [#allocation8], 4
      %s54 = int_to_ptr.vmem [resolvable:$true] %s53
      %59 = dma.hbm_to_vmem [thread:$0]  %s3, 5120, %s54, [#allocation9], 64, 64, 4
    $region17: #{tpu_custom_call.1} parent=1 // pred_fallthru
      _
    // Predicated region
    $region18: #{tpu_custom_call.1} parent=1 // pred_check
      _
    $region19: #{tpu_custom_call.1} parent=1 // pred_check_branch
      %61 = sbr.rel (0) target = $region21
    $region20: #{tpu_custom_call.1} parent=1 // pred_region
      %s63 = ssub.s32 256, 256
      %64 = vsyncadd [#allocation9], %s63
      %s65 = sshll.u32 [#allocation10], 4
      %s66 = int_to_ptr.vmem [resolvable:$true] %s65
      %71 = dma.hbm_to_vmem [thread:$0]  %s4, 256, %s66, [#allocation9], 128, 128, 8
    $region21: #{tpu_custom_call.1} parent=1 // pred_fallthru
      _
    // Predicated region
    $region22: #{tpu_custom_call.1} parent=1 // pred_check
      _
    $region23: #{tpu_custom_call.1} parent=1 // pred_check_branch
      %73 = sbr.rel (0) target = $region25
    $region24: #{tpu_custom_call.1} parent=1 // pred_region
      %74 = dma.done [#allocation3], 128
    $region25: #{tpu_custom_call.1} parent=1 // pred_fallthru
      _
    // Predicated region
    $region26: #{tpu_custom_call.1} parent=1 // pred_check
      _
    $region27: #{tpu_custom_call.1} parent=1 // pred_check_branch
      %76 = sbr.rel (0) target = $region29
    $region28: #{tpu_custom_call.1} parent=1 // pred_region
      %77 = dma.done [#allocation6], 128
    $region29: #{tpu_custom_call.1} parent=1 // pred_fallthru
      _
    // Predicated region
    $region30: #{tpu_custom_call.1} parent=1 // pred_check
      _
    $region31: #{tpu_custom_call.1} parent=1 // pred_check_branch
      %79 = sbr.rel (0) target = $region33
    $region32: #{tpu_custom_call.1} parent=1 // pred_region
      %80 = dma.done [#allocation6], 128
    $region33: #{tpu_custom_call.1} parent=1 // pred_fallthru
      _
    // Predicated region
    $region34: #{tpu_custom_call.1} parent=1 // pred_check
      _
    $region35: #{tpu_custom_call.1} parent=1 // pred_check_branch
      %82 = sbr.rel (0) target = $region37
    $region36: #{tpu_custom_call.1} parent=1 // pred_region
      %83 = dma.done [#allocation9], 5120
    $region37: #{tpu_custom_call.1} parent=1 // pred_fallthru
      _
    // Predicated region
    $region38: #{tpu_custom_call.1} parent=1 // pred_check
      _
    $region39: #{tpu_custom_call.1} parent=1 // pred_check_branch
      %85 = sbr.rel (0) target = $region41
    $region40: #{tpu_custom_call.1} parent=1 // pred_region
      %86 = dma.done [#allocation9], 256
    $region41: #{tpu_custom_call.1} parent=1 // pred_fallthru
      _
    %v88 = vld [vmem:[#allocation2] sm:$0xf]
    %v89 = vld [vmem:[#allocation2 + $0x4] sm:$0xf]
    %v90 = vld [vmem:[#allocation10] sm:$0xff]
    %v91 = vld [vmem:[#allocation10 + $0x8] sm:$0x7]
    %v92 = vld [vmem:[#allocation5] sm:$0xf]
    %v93 = vld [vmem:[#allocation5 + $0x4] sm:$0xf]
    %v94 = vld [vmem:[#allocation8] sm:$0xf]
    %v95 = vld [vmem:[#allocation8 + $0x4] sm:$0xf]
    %v96 = vld [vmem:[#allocation8 + $0x8] sm:$0xf]
    %v97 = vld [vmem:[#allocation8 + $0xc] sm:$0xf]
    %v98 = vld [vmem:[#allocation8 + $0x10] sm:$0xf]
    %v99 = vld [vmem:[#allocation8 + $0x14] sm:$0xf]
    %v100 = vld [vmem:[#allocation8 + $0x18] sm:$0xf]
    %v101 = vld [vmem:[#allocation8 + $0x1c] sm:$0xf]
    %v102 = vld [vmem:[#allocation8 + $0x20] sm:$0xf]
    %v103 = vld [vmem:[#allocation8 + $0x24] sm:$0xf]
    %v104 = vld [vmem:[#allocation8 + $0x28] sm:$0xf]
    %v105 = vld [vmem:[#allocation8 + $0x2c] sm:$0xf]
    %v106 = vld [vmem:[#allocation8 + $0x30] sm:$0xf]
    %v107 = vld [vmem:[#allocation8 + $0x34] sm:$0xf]
    %v108 = vld [vmem:[#allocation8 + $0x38] sm:$0xf]
    %v109 = vld [vmem:[#allocation8 + $0x3c] sm:$0xf]
    %v112 = vunpack.c.l.b16 %v92
    %v113 = vunpack.c.l.b16 %v93
    %v114 = vpack.c.b16 %v113, %v112
    %v132 = vunpack.c.l.b16 %v94
    %v133 = vunpack.c.l.b16 %v95
    %v134 = vunpack.c.l.b16 %v96
    %v135 = vunpack.c.l.b16 %v97
    %v136 = vunpack.c.l.b16 %v98
    %v137 = vunpack.c.l.b16 %v99
    %v138 = vunpack.c.l.b16 %v100
    %v139 = vunpack.c.l.b16 %v101
    %v140 = vunpack.c.l.b16 %v102
    %v141 = vunpack.c.l.b16 %v103
    %v142 = vunpack.c.l.b16 %v104
    %v143 = vunpack.c.l.b16 %v105
    %v144 = vunpack.c.l.b16 %v106
    %v145 = vunpack.c.l.b16 %v107
    %v146 = vunpack.c.l.b16 %v108
    %v147 = vunpack.c.l.b16 %v109
    %v148 = vpack.c.b16 %v133, %v132
    %v149 = vpack.c.b16 %v135, %v134
    %v150 = vpack.c.b16 %v137, %v136
    %v151 = vpack.c.b16 %v139, %v138
    %v152 = vpack.c.b16 %v141, %v140
    %v153 = vpack.c.b16 %v143, %v142
    %v154 = vpack.c.b16 %v145, %v144
    %v155 = vpack.c.b16 %v147, %v146
    %164 = vmatprep.subr.bf16.mxu0 0
    %165 = vmatpush1.bf16.msra.mxu0 %v148
    %166 = vmatprep.subr.bf16.mxu0 0
    %167 = vmatpush1.bf16.msra.mxu0 %v149
    %168 = vmatprep.subr.bf16.mxu0 0
    %169 = vmatpush1.bf16.msra.mxu0 %v150
    %170 = vmatprep.subr.bf16.mxu0 0
    %171 = vmatpush1.bf16.msra.mxu0 %v151
    %172 = vmatprep.subr.bf16.mxu0 0
    %173 = vmatpush1.bf16.msra.mxu0 %v152
    %174 = vmatprep.subr.bf16.mxu0 0
    %175 = vmatpush1.bf16.msra.mxu0 %v153
    %176 = vmatprep.subr.bf16.mxu0 0
    %177 = vmatpush1.bf16.msra.mxu0 %v154
    %178 = vmatprep.subr.bf16.mxu0 0
    %179 = vmatpush1.bf16.msra.mxu0 %v155
    %180 = vmatprep.subr.bf16.mxu0 0
    %181 = vmatpush1.bf16.msra.mxu0 0
    %182 = vmatprep.subr.bf16.mxu0 0
    %183 = vmatpush1.bf16.msra.mxu0 0
    %184 = vmatprep.subr.bf16.mxu0 0
    %185 = vmatpush1.bf16.msra.mxu0 0
    %186 = vmatprep.subr.bf16.mxu0 0
    %187 = vmatpush1.bf16.msra.mxu0 0
    %188 = vmatprep.subr.bf16.mxu0 0
    %189 = vmatpush1.bf16.msra.mxu0 0
    %190 = vmatprep.subr.bf16.mxu0 0
    %191 = vmatpush1.bf16.msra.mxu0 0
    %192 = vmatprep.subr.bf16.mxu0 0
    %193 = vmatpush1.bf16.msra.mxu0 0
    %194 = vmatprep.subr.bf16.mxu0 0
    %195 = vmatpush1.bf16.msra.mxu0 0
    %196 = vmatprep.mubr.bf16.mxu0 0
    %197 = vmatmul.mubr.bf16.gmra.mrb[0].mxu0 %v114
    %v198 = vpop.f32.mrb[0].mxu0
    %v199 = vadd.f32 0.0, %v198
    %v200 = vpop.f32.mrb[0].mxu0
    %v201 = vpop.f32.mrb[0].mxu0
    %v202 = vadd.f32 0.0, %v201
    %v203 = vpop.f32.mrb[0].mxu0
    %204 = vdwg.mxu0
    %v205 = vpack.c.bf16 %v202, %v199
    %v206 = vlaneseq
    %v207 = vshrl.u32 %v206, 7
    %v208 = vsub.s32 0, %v207
    %v209 = vrot.slane %v90, %v208
    %v212 = vunpack.c.l.b16 %v88
    %v213 = vunpack.c.l.b16 %v89
    %v214 = vpack.c.b16 %v213, %v212
    %vm215 = vcmask 130048
    %v217 = vsel %vm215, %v214, 0
    %219 = vmatprep.subr.bf16.mxu0 0
    %220 = vmatpush1.bf16.msra.mxu0 %v205
    %221 = vmatprep.subr.bf16.mxu0 0
    %222 = vmatpush1.bf16.msra.mxu0 0
    %223 = vmatprep.subr.bf16.mxu0 0
    %224 = vmatpush1.bf16.msra.mxu0 0
    %225 = vmatprep.subr.bf16.mxu0 0
    %226 = vmatpush1.bf16.msra.mxu0 0
    %227 = vmatprep.subr.bf16.mxu0 0
    %228 = vmatpush1.bf16.msra.mxu0 0
    %229 = vmatprep.subr.bf16.mxu0 0
    %230 = vmatpush1.bf16.msra.mxu0 0
    %231 = vmatprep.subr.bf16.mxu0 0
    %232 = vmatpush1.bf16.msra.mxu0 0
    %233 = vmatprep.subr.bf16.mxu0 0
    %234 = vmatpush1.bf16.msra.mxu0 0
    %235 = vmatprep.subr.bf16.mxu0 0
    %236 = vmatpush1.bf16.msra.mxu0 0
    %237 = vmatprep.subr.bf16.mxu0 0
    %238 = vmatpush1.bf16.msra.mxu0 0
    %239 = vmatprep.subr.bf16.mxu0 0
    %240 = vmatpush1.bf16.msra.mxu0 0
    %241 = vmatprep.subr.bf16.mxu0 0
    %242 = vmatpush1.bf16.msra.mxu0 0
    %243 = vmatprep.subr.bf16.mxu0 0
    %244 = vmatpush1.bf16.msra.mxu0 0
    %245 = vmatprep.subr.bf16.mxu0 0
    %246 = vmatpush1.bf16.msra.mxu0 0
    %247 = vmatprep.subr.bf16.mxu0 0
    %248 = vmatpush1.bf16.msra.mxu0 0
    %249 = vmatprep.subr.bf16.mxu0 0
    %250 = vmatpush1.bf16.msra.mxu0 0
    %251 = vmatprep.mubr.bf16.mxu0 0
    %252 = vmatmul.mubr.bf16.gmra.mrb[0].mxu0 %v217
    %v253 = vpop.f32.mrb[0].mxu0
    %v254 = vadd.f32 %v209, %v253
    %v255 = vpop.f32.mrb[0].mxu0
    %v256 = vpop.f32.mrb[0].mxu0
    %v257 = vadd.f32 %v209, %v256
    %v258 = vpop.f32.mrb[0].mxu0
    %259 = vdwg.mxu0
    %v260 = vmax.f32 %v254, 0.0
    %v261 = vmax.f32 %v257, 0.0
    %v262 = vadd.f32 %v260, %v261
    %v263 = vrot.slane %v262, 4
    %v264 = vadd.f32 %v262, %v263
    %v265 = vrot.slane %v264, 2
    %v266 = vadd.f32 %v264, %v265
    %v267 = vrot.slane %v266, 1
    %v268 = vadd.f32 %v266, %v267
    %v269 = vmul.f32 %v260, %v260
    %v270 = vmul.f32 %v261, %v261
    %v271 = vadd.f32 %v269, %v270
    %v272 = vrot.slane %v271, 4
    %v273 = vadd.f32 %v271, %v272
    %v274 = vrot.slane %v273, 2
    %v275 = vadd.f32 %v273, %v274
    %v276 = vrot.slane %v275, 1
    %v277 = vadd.f32 %v275, %v276
    %v278 = vmul.f32 %v268, 0.0625
    %v279 = vmul.f32 %v277, 0.0625
    %v280 = vmul.f32 %v278, %v278
    %v281 = vsub.f32 %v279, %v280
    %v282 = vmax.f32 %v281, 0.0
    %v283 = vsub.f32 %v260, %v278
    %v284 = vsub.f32 %v261, %v278
    %v285 = vadd.f32 %v282, 1e-05
    %v286 = vrsqrt.pop %v285
    %v287 = vmul.f32 %v283, %v286
    %v288 = vmul.f32 %v284, %v286
    %v289 = vlaneseq
    %v290 = vshrl.u32 %v289, 7
    %v291 = vsub.s32 1, %v290
    %v292 = vrot.slane %v90, %v291
    %v293 = vmul.f32 %v287, %v292
    %v294 = vmul.f32 %v288, %v292
    %v295 = vlaneseq
    %v296 = vshrl.u32 %v295, 7
    %v297 = vsub.s32 2, %v296
    %v298 = vrot.slane %v90, %v297
    %v299 = vadd.f32 %v293, %v298
    %v300 = vadd.f32 %v294, %v298
    %v301 = vpack.c.bf16 %v300, %v299
    %s302 = scalar_lea.vmem [#allocation8], 64
    %v303 = vld [vmem:[%s302] sm:$0xf]
    %v304 = vld [vmem:[%s302 + $0x4] sm:$0xf]
    %v305 = vld [vmem:[%s302 + $0x8] sm:$0xf]
    %v306 = vld [vmem:[%s302 + $0xc] sm:$0xf]
    %v307 = vld [vmem:[%s302 + $0x10] sm:$0xf]
    %v308 = vld [vmem:[%s302 + $0x14] sm:$0xf]
    %v309 = vld [vmem:[%s302 + $0x18] sm:$0xf]
    %v310 = vld [vmem:[%s302 + $0x1c] sm:$0xf]
    %v311 = vld [vmem:[%s302 + $0x20] sm:$0xf]
    %v312 = vld [vmem:[%s302 + $0x24] sm:$0xf]
    %v313 = vld [vmem:[%s302 + $0x28] sm:$0xf]
    %v314 = vld [vmem:[%s302 + $0x2c] sm:$0xf]
    %v315 = vld [vmem:[%s302 + $0x30] sm:$0xf]
    %v316 = vld [vmem:[%s302 + $0x34] sm:$0xf]
    %v317 = vld [vmem:[%s302 + $0x38] sm:$0xf]
    %v318 = vld [vmem:[%s302 + $0x3c] sm:$0xf]
    %v335 = vunpack.c.l.b16 %v303
    %v336 = vunpack.c.l.b16 %v304
    %v337 = vunpack.c.l.b16 %v305
    %v338 = vunpack.c.l.b16 %v306
    %v339 = vunpack.c.l.b16 %v307
    %v340 = vunpack.c.l.b16 %v308
    %v341 = vunpack.c.l.b16 %v309
    %v342 = vunpack.c.l.b16 %v310
    %v343 = vunpack.c.l.b16 %v311
    %v344 = vunpack.c.l.b16 %v312
    %v345 = vunpack.c.l.b16 %v313
    %v346 = vunpack.c.l.b16 %v314
    %v347 = vunpack.c.l.b16 %v315
    %v348 = vunpack.c.l.b16 %v316
    %v349 = vunpack.c.l.b16 %v317
    %v350 = vunpack.c.l.b16 %v318
    %v351 = vpack.c.b16 %v336, %v335
    %v352 = vpack.c.b16 %v338, %v337
    %v353 = vpack.c.b16 %v340, %v339
    %v354 = vpack.c.b16 %v342, %v341
    %v355 = vpack.c.b16 %v344, %v343
    %v356 = vpack.c.b16 %v346, %v345
    %v357 = vpack.c.b16 %v348, %v347
    %v358 = vpack.c.b16 %v350, %v349
    %367 = vmatprep.subr.bf16.mxu0 0
    %368 = vmatpush1.bf16.msra.mxu0 %v351
    %369 = vmatprep.subr.bf16.mxu0 0
    %370 = vmatpush1.bf16.msra.mxu0 %v352
    %371 = vmatprep.subr.bf16.mxu0 0
    %372 = vmatpush1.bf16.msra.mxu0 %v353
    %373 = vmatprep.subr.bf16.mxu0 0
    %374 = vmatpush1.bf16.msra.mxu0 %v354
    %375 = vmatprep.subr.bf16.mxu0 0
    %376 = vmatpush1.bf16.msra.mxu0 %v355
    %377 = vmatprep.subr.bf16.mxu0 0
    %378 = vmatpush1.bf16.msra.mxu0 %v356
    %379 = vmatprep.subr.bf16.mxu0 0
    %380 = vmatpush1.bf16.msra.mxu0 %v357
    %381 = vmatprep.subr.bf16.mxu0 0
    %382 = vmatpush1.bf16.msra.mxu0 %v358
    %383 = vmatprep.subr.bf16.mxu0 0
    %384 = vmatpush1.bf16.msra.mxu0 0
    %385 = vmatprep.subr.bf16.mxu0 0
    %386 = vmatpush1.bf16.msra.mxu0 0
    %387 = vmatprep.subr.bf16.mxu0 0
    %388 = vmatpush1.bf16.msra.mxu0 0
    %389 = vmatprep.subr.bf16.mxu0 0
    %390 = vmatpush1.bf16.msra.mxu0 0
    %391 = vmatprep.subr.bf16.mxu0 0
    %392 = vmatpush1.bf16.msra.mxu0 0
    %393 = vmatprep.subr.bf16.mxu0 0
    %394 = vmatpush1.bf16.msra.mxu0 0
    %395 = vmatprep.subr.bf16.mxu0 0
    %396 = vmatpush1.bf16.msra.mxu0 0
    %397 = vmatprep.subr.bf16.mxu0 0
    %398 = vmatpush1.bf16.msra.mxu0 0
    %399 = vmatprep.mubr.bf16.mxu0 0
    %400 = vmatmul.mubr.bf16.gmra.mrb[0].mxu0 %v301
    %v401 = vpop.f32.mrb[0].mxu0
    %v402 = vadd.f32 0.0, %v401
    %v403 = vpop.f32.mrb[0].mxu0
    %v404 = vpop.f32.mrb[0].mxu0
    %v405 = vadd.f32 0.0, %v404
    %v406 = vpop.f32.mrb[0].mxu0
    %407 = vdwg.mxu0
    %v408 = vpack.c.bf16 %v405, %v402
    %v409 = vlaneseq
    %v410 = vshrl.u32 %v409, 7
    %v411 = vsub.s32 3, %v410
    %v412 = vrot.slane %v90, %v411
    %413 = vmatprep.subr.bf16.mxu0 0
    %414 = vmatpush1.bf16.msra.mxu0 %v408
    %415 = vmatprep.subr.bf16.mxu0 0
    %416 = vmatpush1.bf16.msra.mxu0 0
    %417 = vmatprep.subr.bf16.mxu0 0
    %418 = vmatpush1.bf16.msra.mxu0 0
    %419 = vmatprep.subr.bf16.mxu0 0
    %420 = vmatpush1.bf16.msra.mxu0 0
    %421 = vmatprep.subr.bf16.mxu0 0
    %422 = vmatpush1.bf16.msra.mxu0 0
    %423 = vmatprep.subr.bf16.mxu0 0
    %424 = vmatpush1.bf16.msra.mxu0 0
    %425 = vmatprep.subr.bf16.mxu0 0
    %426 = vmatpush1.bf16.msra.mxu0 0
    %427 = vmatprep.subr.bf16.mxu0 0
    %428 = vmatpush1.bf16.msra.mxu0 0
    %429 = vmatprep.subr.bf16.mxu0 0
    %430 = vmatpush1.bf16.msra.mxu0 0
    %431 = vmatprep.subr.bf16.mxu0 0
    %432 = vmatpush1.bf16.msra.mxu0 0
    %433 = vmatprep.subr.bf16.mxu0 0
    %434 = vmatpush1.bf16.msra.mxu0 0
    %435 = vmatprep.subr.bf16.mxu0 0
    %436 = vmatpush1.bf16.msra.mxu0 0
    %437 = vmatprep.subr.bf16.mxu0 0
    %438 = vmatpush1.bf16.msra.mxu0 0
    %439 = vmatprep.subr.bf16.mxu0 0
    %440 = vmatpush1.bf16.msra.mxu0 0
    %441 = vmatprep.subr.bf16.mxu0 0
    %442 = vmatpush1.bf16.msra.mxu0 0
    %443 = vmatprep.subr.bf16.mxu0 0
    %444 = vmatpush1.bf16.msra.mxu0 0
    %445 = vmatprep.mubr.bf16.mxu0 0
    %446 = vmatmul.mubr.bf16.gmra.mrb[0].mxu0 %v217
    %v447 = vpop.f32.mrb[0].mxu0
    %v448 = vadd.f32 %v412, %v447
    %v449 = vpop.f32.mrb[0].mxu0
    %v450 = vpop.f32.mrb[0].mxu0
    %v451 = vadd.f32 %v412, %v450
    %v452 = vpop.f32.mrb[0].mxu0
    %453 = vdwg.mxu0
    %v454 = vmax.f32 %v448, 0.0
    %v455 = vmax.f32 %v451, 0.0
    %v456 = vadd.f32 %v454, %v455
    %v457 = vrot.slane %v456, 4
    %v458 = vadd.f32 %v456, %v457
    %v459 = vrot.slane %v458, 2
    %v460 = vadd.f32 %v458, %v459
    %v461 = vrot.slane %v460, 1
    %v462 = vadd.f32 %v460, %v461
    %v463 = vmul.f32 %v454, %v454
    %v464 = vmul.f32 %v455, %v455
    %v465 = vadd.f32 %v463, %v464
    %v466 = vrot.slane %v465, 4
    %v467 = vadd.f32 %v465, %v466
    %v468 = vrot.slane %v467, 2
    %v469 = vadd.f32 %v467, %v468
    %v470 = vrot.slane %v469, 1
    %v471 = vadd.f32 %v469, %v470
    %v472 = vmul.f32 %v462, 0.0625
    %v473 = vmul.f32 %v471, 0.0625
    %v474 = vmul.f32 %v472, %v472
    %v475 = vsub.f32 %v473, %v474
    %v476 = vmax.f32 %v475, 0.0
    %v477 = vsub.f32 %v454, %v472
    %v478 = vsub.f32 %v455, %v472
    %v479 = vadd.f32 %v476, 1e-05
    %v480 = vrsqrt.pop %v479
    %v481 = vmul.f32 %v477, %v480
    %v482 = vmul.f32 %v478, %v480
    %v483 = vlaneseq
    %v484 = vshrl.u32 %v483, 7
    %v485 = vsub.s32 4, %v484
    %v486 = vrot.slane %v90, %v485
    %v487 = vmul.f32 %v481, %v486
    %v488 = vmul.f32 %v482, %v486
    %v489 = vlaneseq
    %v490 = vshrl.u32 %v489, 7
    %v491 = vsub.s32 5, %v490
    %v492 = vrot.slane %v90, %v491
    %v493 = vadd.f32 %v487, %v492
    %v494 = vadd.f32 %v488, %v492
    %v495 = vpack.c.bf16 %v494, %v493
    %s496 = scalar_lea.vmem [#allocation8], 128
    %v497 = vld [vmem:[%s496] sm:$0xf]
    %v498 = vld [vmem:[%s496 + $0x4] sm:$0xf]
    %v499 = vld [vmem:[%s496 + $0x8] sm:$0xf]
    %v500 = vld [vmem:[%s496 + $0xc] sm:$0xf]
    %v501 = vld [vmem:[%s496 + $0x10] sm:$0xf]
    %v502 = vld [vmem:[%s496 + $0x14] sm:$0xf]
    %v503 = vld [vmem:[%s496 + $0x18] sm:$0xf]
    %v504 = vld [vmem:[%s496 + $0x1c] sm:$0xf]
    %v505 = vld [vmem:[%s496 + $0x20] sm:$0xf]
    %v506 = vld [vmem:[%s496 + $0x24] sm:$0xf]
    %v507 = vld [vmem:[%s496 + $0x28] sm:$0xf]
    %v508 = vld [vmem:[%s496 + $0x2c] sm:$0xf]
    %v509 = vld [vmem:[%s496 + $0x30] sm:$0xf]
    %v510 = vld [vmem:[%s496 + $0x34] sm:$0xf]
    %v511 = vld [vmem:[%s496 + $0x38] sm:$0xf]
    %v512 = vld [vmem:[%s496 + $0x3c] sm:$0xf]
    %v529 = vunpack.c.l.b16 %v497
    %v530 = vunpack.c.l.b16 %v498
    %v531 = vunpack.c.l.b16 %v499
    %v532 = vunpack.c.l.b16 %v500
    %v533 = vunpack.c.l.b16 %v501
    %v534 = vunpack.c.l.b16 %v502
    %v535 = vunpack.c.l.b16 %v503
    %v536 = vunpack.c.l.b16 %v504
    %v537 = vunpack.c.l.b16 %v505
    %v538 = vunpack.c.l.b16 %v506
    %v539 = vunpack.c.l.b16 %v507
    %v540 = vunpack.c.l.b16 %v508
    %v541 = vunpack.c.l.b16 %v509
    %v542 = vunpack.c.l.b16 %v510
    %v543 = vunpack.c.l.b16 %v511
    %v544 = vunpack.c.l.b16 %v512
    %v545 = vpack.c.b16 %v530, %v529
    %v546 = vpack.c.b16 %v532, %v531
    %v547 = vpack.c.b16 %v534, %v533
    %v548 = vpack.c.b16 %v536, %v535
    %v549 = vpack.c.b16 %v538, %v537
    %v550 = vpack.c.b16 %v540, %v539
    %v551 = vpack.c.b16 %v542, %v541
    %v552 = vpack.c.b16 %v544, %v543
    %561 = vmatprep.subr.bf16.mxu0 0
    %562 = vmatpush1.bf16.msra.mxu0 %v545
    %563 = vmatprep.subr.bf16.mxu0 0
    %564 = vmatpush1.bf16.msra.mxu0 %v546
    %565 = vmatprep.subr.bf16.mxu0 0
    %566 = vmatpush1.bf16.msra.mxu0 %v547
    %567 = vmatprep.subr.bf16.mxu0 0
    %568 = vmatpush1.bf16.msra.mxu0 %v548
    %569 = vmatprep.subr.bf16.mxu0 0
    %570 = vmatpush1.bf16.msra.mxu0 %v549
    %571 = vmatprep.subr.bf16.mxu0 0
    %572 = vmatpush1.bf16.msra.mxu0 %v550
    %573 = vmatprep.subr.bf16.mxu0 0
    %574 = vmatpush1.bf16.msra.mxu0 %v551
    %575 = vmatprep.subr.bf16.mxu0 0
    %576 = vmatpush1.bf16.msra.mxu0 %v552
    %577 = vmatprep.subr.bf16.mxu0 0
    %578 = vmatpush1.bf16.msra.mxu0 0
    %579 = vmatprep.subr.bf16.mxu0 0
    %580 = vmatpush1.bf16.msra.mxu0 0
    %581 = vmatprep.subr.bf16.mxu0 0
    %582 = vmatpush1.bf16.msra.mxu0 0
    %583 = vmatprep.subr.bf16.mxu0 0
    %584 = vmatpush1.bf16.msra.mxu0 0
    %585 = vmatprep.subr.bf16.mxu0 0
    %586 = vmatpush1.bf16.msra.mxu0 0
    %587 = vmatprep.subr.bf16.mxu0 0
    %588 = vmatpush1.bf16.msra.mxu0 0
    %589 = vmatprep.subr.bf16.mxu0 0
    %590 = vmatpush1.bf16.msra.mxu0 0
    %591 = vmatprep.subr.bf16.mxu0 0
    %592 = vmatpush1.bf16.msra.mxu0 0
    %593 = vmatprep.mubr.bf16.mxu0 0
    %594 = vmatmul.mubr.bf16.gmra.mrb[0].mxu0 %v495
    %v595 = vpop.f32.mrb[0].mxu0
    %v596 = vadd.f32 0.0, %v595
    %v597 = vpop.f32.mrb[0].mxu0
    %v598 = vpop.f32.mrb[0].mxu0
    %v599 = vadd.f32 0.0, %v598
    %v600 = vpop.f32.mrb[0].mxu0
    %601 = vdwg.mxu0
    %v602 = vpack.c.bf16 %v599, %v596
    %v603 = vlaneseq
    %v604 = vshrl.u32 %v603, 7
    %v605 = vsub.s32 6, %v604
    %v606 = vrot.slane %v90, %v605
    %607 = vmatprep.subr.bf16.mxu0 0
    %608 = vmatpush1.bf16.msra.mxu0 %v602
    %609 = vmatprep.subr.bf16.mxu0 0
    %610 = vmatpush1.bf16.msra.mxu0 0
    %611 = vmatprep.subr.bf16.mxu0 0
    %612 = vmatpush1.bf16.msra.mxu0 0
    %613 = vmatprep.subr.bf16.mxu0 0
    %614 = vmatpush1.bf16.msra.mxu0 0
    %615 = vmatprep.subr.bf16.mxu0 0
    %616 = vmatpush1.bf16.msra.mxu0 0
    %617 = vmatprep.subr.bf16.mxu0 0
    %618 = vmatpush1.bf16.msra.mxu0 0
    %619 = vmatprep.subr.bf16.mxu0 0
    %620 = vmatpush1.bf16.msra.mxu0 0
    %621 = vmatprep.subr.bf16.mxu0 0
    %622 = vmatpush1.bf16.msra.mxu0 0
    %623 = vmatprep.subr.bf16.mxu0 0
    %624 = vmatpush1.bf16.msra.mxu0 0
    %625 = vmatprep.subr.bf16.mxu0 0
    %626 = vmatpush1.bf16.msra.mxu0 0
    %627 = vmatprep.subr.bf16.mxu0 0
    %628 = vmatpush1.bf16.msra.mxu0 0
    %629 = vmatprep.subr.bf16.mxu0 0
    %630 = vmatpush1.bf16.msra.mxu0 0
    %631 = vmatprep.subr.bf16.mxu0 0
    %632 = vmatpush1.bf16.msra.mxu0 0
    %633 = vmatprep.subr.bf16.mxu0 0
    %634 = vmatpush1.bf16.msra.mxu0 0
    %635 = vmatprep.subr.bf16.mxu0 0
    %636 = vmatpush1.bf16.msra.mxu0 0
    %637 = vmatprep.subr.bf16.mxu0 0
    %638 = vmatpush1.bf16.msra.mxu0 0
    %639 = vmatprep.mubr.bf16.mxu0 0
    %640 = vmatmul.mubr.bf16.gmra.mrb[0].mxu0 %v217
    %v641 = vpop.f32.mrb[0].mxu0
    %v642 = vadd.f32 %v606, %v641
    %v643 = vpop.f32.mrb[0].mxu0
    %v644 = vpop.f32.mrb[0].mxu0
    %v645 = vadd.f32 %v606, %v644
    %v646 = vpop.f32.mrb[0].mxu0
    %647 = vdwg.mxu0
    %v648 = vmax.f32 %v642, 0.0
    %v649 = vmax.f32 %v645, 0.0
    %v650 = vadd.f32 %v648, %v649
    %v651 = vrot.slane %v650, 4
    %v652 = vadd.f32 %v650, %v651
    %v653 = vrot.slane %v652, 2
    %v654 = vadd.f32 %v652, %v653
    %v655 = vrot.slane %v654, 1
    %v656 = vadd.f32 %v654, %v655
    %v657 = vmul.f32 %v648, %v648
    %v658 = vmul.f32 %v649, %v649
    %v659 = vadd.f32 %v657, %v658
    %v660 = vrot.slane %v659, 4
    %v661 = vadd.f32 %v659, %v660
    %v662 = vrot.slane %v661, 2
    %v663 = vadd.f32 %v661, %v662
    %v664 = vrot.slane %v663, 1
    %v665 = vadd.f32 %v663, %v664
    %v666 = vmul.f32 %v656, 0.0625
    %v667 = vmul.f32 %v665, 0.0625
    %v668 = vmul.f32 %v666, %v666
    %v669 = vsub.f32 %v667, %v668
    %v670 = vmax.f32 %v669, 0.0
    %v671 = vsub.f32 %v648, %v666
    %v672 = vsub.f32 %v649, %v666
    %v673 = vadd.f32 %v670, 1e-05
    %v674 = vrsqrt.pop %v673
    %v675 = vmul.f32 %v671, %v674
    %v676 = vmul.f32 %v672, %v674
    %v677 = vlaneseq
    %v678 = vshrl.u32 %v677, 7
    %v679 = vsub.s32 7, %v678
    %v680 = vrot.slane %v90, %v679
    %v681 = vmul.f32 %v675, %v680
    %v682 = vmul.f32 %v676, %v680
    %v683 = vlaneseq
    %v684 = vshrl.u32 %v683, 7
    %v685 = vsub.s32 0, %v684
    %v686 = vrot.slane %v91, %v685
    %v687 = vadd.f32 %v681, %v686
    %v688 = vadd.f32 %v682, %v686
    %v689 = vld [vmem:[#allocation7] sm:$0xff]
    %v690 = vlaneseq
    %v691 = vshrl.u32 %v690, 7
    %v692 = vsub.s32 0, %v691
    %v693 = vrot.slane %v689, %v692
    %695 = vbcast.lane.b32.xlu0 %v693, 256
    %v696 = vpop.permute.xlu0 %695
    %s698 = sor.u32 256, 8
    %699 = vbcast.lane.b32.xlu0 %v693, %s698
    %v700 = vpop.permute.xlu0 %699
    %v701 = vlaneseq
    %v702 = vshrl.u32 %v701, 7
    %v703 = vsub.s32 1, %v702
    %v704 = vrot.slane %v689, %v703
    %706 = vbcast.lane.b32.xlu0 %v704, 256
    %v707 = vpop.permute.xlu0 %706
    %s709 = sor.u32 256, 8
    %710 = vbcast.lane.b32.xlu0 %v704, %s709
    %v711 = vpop.permute.xlu0 %710
    %v712 = vlaneseq
    %v713 = vshrl.u32 %v712, 7
    %v714 = vsub.s32 2, %v713
    %v715 = vrot.slane %v689, %v714
    %717 = vbcast.lane.b32.xlu0 %v715, 256
    %v718 = vpop.permute.xlu0 %717
    %s720 = sor.u32 256, 8
    %721 = vbcast.lane.b32.xlu0 %v715, %s720
    %v722 = vpop.permute.xlu0 %721
    %v723 = vlaneseq
    %v724 = vshrl.u32 %v723, 7
    %v725 = vsub.s32 3, %v724
    %v726 = vrot.slane %v689, %v725
    %728 = vbcast.lane.b32.xlu0 %v726, 256
    %v729 = vpop.permute.xlu0 %728
    %s731 = sor.u32 256, 8
    %732 = vbcast.lane.b32.xlu0 %v726, %s731
    %v733 = vpop.permute.xlu0 %732
    %v734 = vlaneseq
    %v735 = vshrl.u32 %v734, 7
    %v736 = vsub.s32 4, %v735
    %v737 = vrot.slane %v689, %v736
    %739 = vbcast.lane.b32.xlu0 %v737, 256
    %v740 = vpop.permute.xlu0 %739
    %s742 = sor.u32 256, 8
    %743 = vbcast.lane.b32.xlu0 %v737, %s742
    %v744 = vpop.permute.xlu0 %743
    %v745 = vlaneseq
    %v746 = vshrl.u32 %v745, 7
    %v747 = vsub.s32 5, %v746
    %v748 = vrot.slane %v689, %v747
    %750 = vbcast.lane.b32.xlu0 %v748, 256
    %v751 = vpop.permute.xlu0 %750
    %s753 = sor.u32 256, 8
    %754 = vbcast.lane.b32.xlu0 %v748, %s753
    %v755 = vpop.permute.xlu0 %754
    %v756 = vlaneseq
    %v757 = vshrl.u32 %v756, 7
    %v758 = vsub.s32 6, %v757
    %v759 = vrot.slane %v689, %v758
    %761 = vbcast.lane.b32.xlu0 %v759, 256
    %v762 = vpop.permute.xlu0 %761
    %s764 = sor.u32 256, 8
    %765 = vbcast.lane.b32.xlu0 %v759, %s764
    %v766 = vpop.permute.xlu0 %765
    %v767 = vlaneseq
    %v768 = vshrl.u32 %v767, 7
    %v769 = vsub.s32 7, %v768
    %v770 = vrot.slane %v689, %v769
    %772 = vbcast.lane.b32.xlu0 %v770, 256
    %v773 = vpop.permute.xlu0 %772
    %s775 = sor.u32 256, 8
    %776 = vbcast.lane.b32.xlu0 %v770, %s775
    %v777 = vpop.permute.xlu0 %776
    %v778 = vadd.f32 %v687, %v696
    %v779 = vadd.f32 %v688, %v700
    %v780 = vadd.f32 %v687, %v707
    %v781 = vadd.f32 %v688, %v711
    %v782 = vadd.f32 %v687, %v718
    %v783 = vadd.f32 %v688, %v722
    %v784 = vadd.f32 %v687, %v729
    %v785 = vadd.f32 %v688, %v733
    %v786 = vadd.f32 %v687, %v740
    %v787 = vadd.f32 %v688, %v744
    %v788 = vadd.f32 %v687, %v751
    %v789 = vadd.f32 %v688, %v755
    %v790 = vadd.f32 %v687, %v762
    %v791 = vadd.f32 %v688, %v766
    %v792 = vadd.f32 %v687, %v773
    %v793 = vadd.f32 %v688, %v777
    %v794 = vmax.f32 %v778, %v779
    %v795 = vrot.slane %v794, 4
    %v796 = vmax.f32 %v794, %v795
    %v797 = vrot.slane %v796, 2
    %v798 = vmax.f32 %v796, %v797
    %v799 = vrot.slane %v798, 1
    %v800 = vmax.f32 %v798, %v799
    %v801 = vmax.f32 %v780, %v781
    %v802 = vrot.slane %v801, 4
    %v803 = vmax.f32 %v801, %v802
    %v804 = vrot.slane %v803, 2
    %v805 = vmax.f32 %v803, %v804
    %v806 = vrot.slane %v805, 1
    %v807 = vmax.f32 %v805, %v806
    %v808 = vmax.f32 %v782, %v783
    %v809 = vrot.slane %v808, 4
    %v810 = vmax.f32 %v808, %v809
    %v811 = vrot.slane %v810, 2
    %v812 = vmax.f32 %v810, %v811
    %v813 = vrot.slane %v812, 1
    %v814 = vmax.f32 %v812, %v813
    %v815 = vmax.f32 %v784, %v785
    %v816 = vrot.slane %v815, 4
    %v817 = vmax.f32 %v815, %v816
    %v818 = vrot.slane %v817, 2
    %v819 = vmax.f32 %v817, %v818
    %v820 = vrot.slane %v819, 1
    %v821 = vmax.f32 %v819, %v820
    %v822 = vmax.f32 %v786, %v787
    %v823 = vrot.slane %v822, 4
    %v824 = vmax.f32 %v822, %v823
    %v825 = vrot.slane %v824, 2
    %v826 = vmax.f32 %v824, %v825
    %v827 = vrot.slane %v826, 1
    %v828 = vmax.f32 %v826, %v827
    %v829 = vmax.f32 %v788, %v789
    %v830 = vrot.slane %v829, 4
    %v831 = vmax.f32 %v829, %v830
    %v832 = vrot.slane %v831, 2
    %v833 = vmax.f32 %v831, %v832
    %v834 = vrot.slane %v833, 1
    %v835 = vmax.f32 %v833, %v834
    %v836 = vmax.f32 %v790, %v791
    %v837 = vrot.slane %v836, 4
    %v838 = vmax.f32 %v836, %v837
    %v839 = vrot.slane %v838, 2
    %v840 = vmax.f32 %v838, %v839
    %v841 = vrot.slane %v840, 1
    %v842 = vmax.f32 %v840, %v841
    %v843 = vmax.f32 %v792, %v793
    %v844 = vrot.slane %v843, 4
    %v845 = vmax.f32 %v843, %v844
    %v846 = vrot.slane %v845, 2
    %v847 = vmax.f32 %v845, %v846
    %v848 = vrot.slane %v847, 1
    %v849 = vmax.f32 %v847, %v848
    %v850 = vpack.c.bf16 %v800, %v800
    %v851 = vpack.c.bf16 %v807, %v807
    %v852 = vpack.c.bf16 %v814, %v814
    %v853 = vpack.c.bf16 %v821, %v821
    %v854 = vpack.c.bf16 %v828, %v828
    %v855 = vpack.c.bf16 %v835, %v835
    %v856 = vpack.c.bf16 %v842, %v842
    %v857 = vpack.c.bf16 %v849, %v849
    %s858 = scalar_lea.vmem [#allocation8], 192
    %v859 = vld [vmem:[%s858] sm:$0xf]
    %v860 = vld [vmem:[%s858 + $0x4] sm:$0xf]
    %v861 = vld [vmem:[%s858 + $0x8] sm:$0xf]
    %v862 = vld [vmem:[%s858 + $0xc] sm:$0xf]
    %v863 = vld [vmem:[%s858 + $0x10] sm:$0xf]
    %v864 = vld [vmem:[%s858 + $0x14] sm:$0xf]
    %v865 = vld [vmem:[%s858 + $0x18] sm:$0xf]
    %v866 = vld [vmem:[%s858 + $0x1c] sm:$0xf]
    %v867 = vld [vmem:[%s858 + $0x20] sm:$0xf]
    %v868 = vld [vmem:[%s858 + $0x24] sm:$0xf]
    %v869 = vld [vmem:[%s858 + $0x28] sm:$0xf]
    %v870 = vld [vmem:[%s858 + $0x2c] sm:$0xf]
    %v871 = vld [vmem:[%s858 + $0x30] sm:$0xf]
    %v872 = vld [vmem:[%s858 + $0x34] sm:$0xf]
    %v873 = vld [vmem:[%s858 + $0x38] sm:$0xf]
    %v874 = vld [vmem:[%s858 + $0x3c] sm:$0xf]
    %v875 = vlaneseq
    %v876 = vshrl.u32 %v875, 7
    %v877 = vsub.s32 1, %v876
    %v878 = vrot.slane %v91, %v877
    %v887 = vunpack.c.l.b16 %v850
    %v888 = vunpack.c.l.b16 %v851
    %v889 = vunpack.c.l.b16 %v852
    %v890 = vunpack.c.l.b16 %v853
    %v891 = vunpack.c.l.b16 %v854
    %v892 = vunpack.c.l.b16 %v855
    %v893 = vunpack.c.l.b16 %v856
    %v894 = vunpack.c.l.b16 %v857
    %vm895 = vcmask 1041409
    %v896 = vsel %vm895, %v888, %v887
    %vm897 = vcmask 1042434
    %v898 = vsel %vm897, %v889, %v896
    %vm899 = vcmask 1043459
    %v900 = vsel %vm899, %v890, %v898
    %vm901 = vcmask 1044484
    %v902 = vsel %vm901, %v891, %v900
    %vm903 = vcmask 1045509
    %v904 = vsel %vm903, %v892, %v902
    %vm905 = vcmask 1046534
    %v906 = vsel %vm905, %v893, %v904
    %vm907 = vcmask 1047559
    %v908 = vsel %vm907, %v894, %v906
    %v909 = vpack.c.b16 %v908, %v908
    %v927 = vunpack.c.l.b16 %v859
    %v928 = vunpack.c.l.b16 %v860
    %v929 = vunpack.c.l.b16 %v861
    %v930 = vunpack.c.l.b16 %v862
    %v931 = vunpack.c.l.b16 %v863
    %v932 = vunpack.c.l.b16 %v864
    %v933 = vunpack.c.l.b16 %v865
    %v934 = vunpack.c.l.b16 %v866
    %v935 = vunpack.c.l.b16 %v867
    %v936 = vunpack.c.l.b16 %v868
    %v937 = vunpack.c.l.b16 %v869
    %v938 = vunpack.c.l.b16 %v870
    %v939 = vunpack.c.l.b16 %v871
    %v940 = vunpack.c.l.b16 %v872
    %v941 = vunpack.c.l.b16 %v873
    %v942 = vunpack.c.l.b16 %v874
    %v943 = vpack.c.b16 %v928, %v927
    %v944 = vpack.c.b16 %v930, %v929
    %v945 = vpack.c.b16 %v932, %v931
    %v946 = vpack.c.b16 %v934, %v933
    %v947 = vpack.c.b16 %v936, %v935
    %v948 = vpack.c.b16 %v938, %v937
    %v949 = vpack.c.b16 %v940, %v939
    %v950 = vpack.c.b16 %v942, %v941
    %959 = vmatprep.subr.bf16.mxu0 0
    %960 = vmatpush1.bf16.msra.mxu0 %v943
    %961 = vmatprep.subr.bf16.mxu0 0
    %962 = vmatpush1.bf16.msra.mxu0 %v944
    %963 = vmatprep.subr.bf16.mxu0 0
    %964 = vmatpush1.bf16.msra.mxu0 %v945
    %965 = vmatprep.subr.bf16.mxu0 0
    %966 = vmatpush1.bf16.msra.mxu0 %v946
    %967 = vmatprep.subr.bf16.mxu0 0
    %968 = vmatpush1.bf16.msra.mxu0 %v947
    %969 = vmatprep.subr.bf16.mxu0 0
    %970 = vmatpush1.bf16.msra.mxu0 %v948
    %971 = vmatprep.subr.bf16.mxu0 0
    %972 = vmatpush1.bf16.msra.mxu0 %v949
    %973 = vmatprep.subr.bf16.mxu0 0
    %974 = vmatpush1.bf16.msra.mxu0 %v950
    %975 = vmatprep.subr.bf16.mxu0 0
    %976 = vmatpush1.bf16.msra.mxu0 0
    %977 = vmatprep.subr.bf16.mxu0 0
    %978 = vmatpush1.bf16.msra.mxu0 0
    %979 = vmatprep.subr.bf16.mxu0 0
    %980 = vmatpush1.bf16.msra.mxu0 0
    %981 = vmatprep.subr.bf16.mxu0 0
    %982 = vmatpush1.bf16.msra.mxu0 0
    %983 = vmatprep.subr.bf16.mxu0 0
    %984 = vmatpush1.bf16.msra.mxu0 0
    %985 = vmatprep.subr.bf16.mxu0 0
    %986 = vmatpush1.bf16.msra.mxu0 0
    %987 = vmatprep.subr.bf16.mxu0 0
    %988 = vmatpush1.bf16.msra.mxu0 0
    %989 = vmatprep.subr.bf16.mxu0 0
    %990 = vmatpush1.bf16.msra.mxu0 0
    %991 = vmatprep.mubr.bf16.mxu0 0
    %992 = vmatmul.mubr.bf16.gmra.mrb[0].mxu0 %v909
    %v993 = vpop.f32.mrb[0].mxu0
    %v994 = vadd.f32 %v878, %v993
    %v995 = vpop.f32.mrb[0].mxu0
    %v996 = vpop.f32.mrb[0].mxu0
    %v997 = vpop.f32.mrb[0].mxu0
    %998 = vdwg.mxu0
    %v999 = vmax.f32 %v994, 0.0
    %v1000 = vpack.c.bf16 %v999, %v999
    %s1001 = scalar_lea.vmem [#allocation8], 256
    %v1002 = vld [vmem:[%s1001] sm:$0xf]
    %v1003 = vld [vmem:[%s1001 + $0x4] sm:$0xf]
    %v1004 = vld [vmem:[%s1001 + $0x8] sm:$0xf]
    %v1005 = vld [vmem:[%s1001 + $0xc] sm:$0xf]
    %v1006 = vld [vmem:[%s1001 + $0x10] sm:$0xf]
    %v1007 = vld [vmem:[%s1001 + $0x14] sm:$0xf]
    %v1008 = vld [vmem:[%s1001 + $0x18] sm:$0xf]
    %v1009 = vld [vmem:[%s1001 + $0x1c] sm:$0xf]
    %v1010 = vld [vmem:[%s1001 + $0x20] sm:$0xf]
    %v1011 = vld [vmem:[%s1001 + $0x24] sm:$0xf]
    %v1012 = vld [vmem:[%s1001 + $0x28] sm:$0xf]
    %v1013 = vld [vmem:[%s1001 + $0x2c] sm:$0xf]
    %v1014 = vld [vmem:[%s1001 + $0x30] sm:$0xf]
    %v1015 = vld [vmem:[%s1001 + $0x34] sm:$0xf]
    %v1016 = vld [vmem:[%s1001 + $0x38] sm:$0xf]
    %v1017 = vld [vmem:[%s1001 + $0x3c] sm:$0xf]
    %v1018 = vlaneseq
    %v1019 = vshrl.u32 %v1018, 7
    %v1020 = vsub.s32 2, %v1019
    %v1021 = vrot.slane %v91, %v1020
    %v1038 = vunpack.c.l.b16 %v1002
    %v1039 = vunpack.c.l.b16 %v1003
    %v1040 = vunpack.c.l.b16 %v1004
    %v1041 = vunpack.c.l.b16 %v1005
    %v1042 = vunpack.c.l.b16 %v1006
    %v1043 = vunpack.c.l.b16 %v1007
    %v1044 = vunpack.c.l.b16 %v1008
    %v1045 = vunpack.c.l.b16 %v1009
    %v1046 = vunpack.c.l.b16 %v1010
    %v1047 = vunpack.c.l.b16 %v1011
    %v1048 = vunpack.c.l.b16 %v1012
    %v1049 = vunpack.c.l.b16 %v1013
    %v1050 = vunpack.c.l.b16 %v1014
    %v1051 = vunpack.c.l.b16 %v1015
    %v1052 = vunpack.c.l.b16 %v1016
    %v1053 = vunpack.c.l.b16 %v1017
    %v1054 = vpack.c.b16 %v1039, %v1038
    %v1055 = vpack.c.b16 %v1041, %v1040
    %v1056 = vpack.c.b16 %v1043, %v1042
    %v1057 = vpack.c.b16 %v1045, %v1044
    %v1058 = vpack.c.b16 %v1047, %v1046
    %v1059 = vpack.c.b16 %v1049, %v1048
    %v1060 = vpack.c.b16 %v1051, %v1050
    %v1061 = vpack.c.b16 %v1053, %v1052
    %1070 = vmatprep.subr.bf16.mxu0 0
    %1071 = vmatpush1.bf16.msra.mxu0 %v1054
    %1072 = vmatprep.subr.bf16.mxu0 0
    %1073 = vmatpush1.bf16.msra.mxu0 %v1055
    %1074 = vmatprep.subr.bf16.mxu0 0
    %1075 = vmatpush1.bf16.msra.mxu0 %v1056
    %1076 = vmatprep.subr.bf16.mxu0 0
    %1077 = vmatpush1.bf16.msra.mxu0 %v1057
    %1078 = vmatprep.subr.bf16.mxu0 0
    %1079 = vmatpush1.bf16.msra.mxu0 %v1058
    %1080 = vmatprep.subr.bf16.mxu0 0
    %1081 = vmatpush1.bf16.msra.mxu0 %v1059
    %1082 = vmatprep.subr.bf16.mxu0 0
    %1083 = vmatpush1.bf16.msra.mxu0 %v1060
    %1084 = vmatprep.subr.bf16.mxu0 0
    %1085 = vmatpush1.bf16.msra.mxu0 %v1061
    %1086 = vmatprep.subr.bf16.mxu0 0
    %1087 = vmatpush1.bf16.msra.mxu0 0
    %1088 = vmatprep.subr.bf16.mxu0 0
    %1089 = vmatpush1.bf16.msra.mxu0 0
    %1090 = vmatprep.subr.bf16.mxu0 0
    %1091 = vmatpush1.bf16.msra.mxu0 0
    %1092 = vmatprep.subr.bf16.mxu0 0
    %1093 = vmatpush1.bf16.msra.mxu0 0
    %1094 = vmatprep.subr.bf16.mxu0 0
    %1095 = vmatpush1.bf16.msra.mxu0 0
    %1096 = vmatprep.subr.bf16.mxu0 0
    %1097 = vmatpush1.bf16.msra.mxu0 0
    %1098 = vmatprep.subr.bf16.mxu0 0
    %1099 = vmatpush1.bf16.msra.mxu0 0
    %1100 = vmatprep.subr.bf16.mxu0 0
    %1101 = vmatpush1.bf16.msra.mxu0 0
    %1102 = vmatprep.mubr.bf16.mxu0 0
    %1103 = vmatmul.mubr.bf16.gmra.mrb[0].mxu0 %v1000
    %v1104 = vpop.f32.mrb[0].mxu0
    %v1105 = vadd.f32 %v1021, %v1104
    %v1106 = vpop.f32.mrb[0].mxu0
    %v1107 = vpop.f32.mrb[0].mxu0
    %v1108 = vpop.f32.mrb[0].mxu0
    %1109 = vdwg.mxu0
    %1110 = vst [vmem:[#allocation11] sm:$0xff] %v1105
    // Predicated region
    $region42: #{tpu_custom_call.1} parent=1 // pred_check
      _
    $region43: #{tpu_custom_call.1} parent=1 // pred_check_branch
      %1112 = sbr.rel (0) target = $region45
    $region44: #{tpu_custom_call.1} parent=1 // pred_region
      %s1114 = ssub.s32 128, 128
      %1115 = vsyncadd [#allocation4], %s1114
      %s1117 = sshll.u32 [#allocation11], 4
      %s1118 = int_to_ptr.vmem [resolvable:$true] %s1117
      %1120 = dma.vmem_to_hbm [thread:$0]  %s1118, 128, %s5, [#allocation4]
    $region45: #{tpu_custom_call.1} parent=1 // pred_fallthru
      _
    // Predicated region
    $region46: #{tpu_custom_call.1} parent=1 // pred_check
      _
    $region47: #{tpu_custom_call.1} parent=1 // pred_check_branch
      %1122 = sbr.rel (0) target = $region49
    $region48: #{tpu_custom_call.1} parent=1 // pred_region
      %1123 = dma.done [#allocation4], 128
    $region49: #{tpu_custom_call.1} parent=1 // pred_fallthru
      _
    %1124 = vsyncpa [#allocation3], 1
    %1125 = vsyncpa [#allocation6], 1
    %1126 = vsyncpa [#allocation9], 1
    %1127 = vsyncpa [#allocation4], 1

</llo_original>
